<compile_context>
chip_gen: v6e
topology: v6e:2x2x1
jax: 0.10.0
libtpu: 0.0.40
codegen_flags: <defaults>
</compile_context>

<pallas_src>
import jax
import jax.numpy as jnp
from jax.experimental import pallas as pl
from jax.experimental.pallas import tpu as pltpu


def _pe_add_kernel(x_ref, pe_ref, o_ref):
    # pe_ref arrives in pe's native dtype; the cast rides the free VPU slot of
    # this purely HBM-bound kernel. Cast-then-add matches `x + pe[:S]` after
    # the module parameter is cast to the activation dtype.
    o_ref[...] = (x_ref[...] + pe_ref[...].astype(x_ref.dtype)).astype(o_ref.dtype)


def _choose_seq_tile(S, B, D, itemsize, *, target_bytes=4 << 20, min_steps=4):
    """Sequence tile:
       - at most ~target_bytes of x per tile (hides the ~0.35us/step overhead,
         keeps the double-buffered live set small),
       - at least `min_steps` grid steps when S allows, so read/write DMA
         streams overlap and both v7x TensorCores get >= 2 pipelined steps.
    The seq axis is a leading block dim, so ts has no (8,128) constraint."""
    bytes_per_row = max(1, B * D * itemsize)
    ts = max(1, target_bytes // bytes_per_row)
    if S > 1:
        ts = min(ts, max(1, -(-S // min_steps)))  # ceil(S / min_steps)
    return int(min(ts, S))


def positional_encoding_forward(x, pe, *, use_pallas=None, donate_x=False):
    """x: (S, B, D), pe: (max_len, 1, D). Returns x + pe[:S] in x's dtype.

    Set donate_x=True only when x is actually donated at the jit boundary
    (jax.jit(..., donate_argnums=...)); otherwise the alias would force XLA to
    make a defensive copy of x."""
    S, B, D = x.shape
    assert pe.shape[0] >= S and pe.shape[1] == 1 and pe.shape[2] == D

    x_item = jnp.dtype(x.dtype).itemsize
    pe_item = jnp.dtype(pe.dtype).itemsize
    # Sublanes per vreg for x's dtype: 8 (f32), 16 (bf16/f16), 32 (8-bit).
    packing = 8 * max(1, 4 // x_item)

    if use_pallas is None:
        # Only take the Pallas path when the (B, D) block plane is vreg-dense
        # and un-padded (masked vst.msk / sublane padding would dominate).
        use_pallas = (D % 128 == 0) and (B > 0) and (B % packing == 0)

    if not use_pallas:
        # Tiny / lane-sparse shapes: let XLA do the broadcast add.
        return x + pe[:S].astype(x.dtype)

    ts = _choose_seq_tile(S, B, D, x_item)
    num_blocks = pl.cdiv(S, ts)

    # Live set: double-buffered x in + out tiles, double-buffered pe tile.
    x_tile_bytes = ts * B * D * x_item
    pe_tile_bytes = ts * D * pe_item
    vmem_needed = 2 * 2 * x_tile_bytes + 2 * pe_tile_bytes + (1 << 20)
    if vmem_needed > (48 << 20):
        # Even a minimal tiling would not fit comfortably in v7x VMEM.
        return x + pe[:S].astype(x.dtype)
    # >= 32 MiB overrides v5e's 16 MiB scoped default; <= 48 MiB stays safely
    # inside v7x's 64 MiB physical VMEM (v5e/v6e have 128 MiB physical).
    vmem_limit = int(max(32 << 20, vmem_needed))

    return pl.pallas_call(
        _pe_add_kernel,
        out_shape=jax.ShapeDtypeStruct((S, B, D), x.dtype),
        grid_spec=pltpu.PrefetchScalarGridSpec(
            num_scalar_prefetch=0,
            grid=(num_blocks,),
            # Last two block dims equal the full array dims, satisfying the
            # (8,128) block constraint. pe is passed whole: only blocks
            # 0..num_blocks-1 (all within max_len >= S) are ever fetched, and
            # any trailing partial block clips identically to x's.
            in_specs=[
                pl.BlockSpec((ts, B, D), lambda i: (i, 0, 0)),
                pl.BlockSpec((ts, 1, D), lambda i: (i, 0, 0)),
            ],
            out_specs=pl.BlockSpec((ts, B, D), lambda i: (i, 0, 0)),
        ),
        compiler_params=pltpu.CompilerParams(
            dimension_semantics=("parallel",),
            vmem_limit_bytes=vmem_limit,
        ),
        # Alias only when the caller really donates x; otherwise XLA inserts a
        # defensive full copy of x that doubles HBM traffic.
        input_output_aliases=({0: 0} if donate_x else {}),
        cost_estimate=pl.CostEstimate(
            flops=S * B * D,
            transcendentals=0,
            bytes_accessed=2 * S * B * D * x_item + S * D * pe_item,
        ),
    )(x, pe)


def positional_encoding_ref(x, pe):
    return x + pe[: x.shape[0]].astype(x.dtype)


if __name__ == "__main__":
    key = jax.random.PRNGKey(0)
    kx, kpe, kx2, kx3 = jax.random.split(key, 4)

    fwd = jax.jit(positional_encoding_forward)

    # 1) Pallas path, f32, lane/sublane-dense (seq=64, batch=8, d_model=128).
    max_len = 300
    S, B, D = 64, 8, 128
    x = jax.random.normal(kx, (S, B, D), dtype=jnp.float32)
    pe = jax.random.normal(kpe, (max_len, 1, D), dtype=jnp.float32)
    out = jax.block_until_ready(fwd(x, pe))
    ref = positional_encoding_ref(x, pe)
    assert out.shape == x.shape and out.dtype == x.dtype
    assert jnp.allclose(out, ref, atol=1e-6, rtol=1e-6)

    # 2) Pallas path, bf16 activations with f32 pe parameter (cast happens
    #    in-kernel); batch=16 satisfies the bf16 sublane-packing gate.
    x_bf = jax.random.normal(kx3, (S, 16, D), dtype=jnp.bfloat16)
    pe_bf = jax.random.normal(kpe, (max_len, 1, D), dtype=jnp.float32)
    out_bf = jax.block_until_ready(fwd(x_bf, pe_bf))
    ref_bf = positional_encoding_ref(x_bf, pe_bf)
    assert out_bf.dtype == jnp.bfloat16
    assert jnp.allclose(out_bf.astype(jnp.float32),
                        ref_bf.astype(jnp.float32), atol=3e-2, rtol=3e-2)

    # 3) Edge blocks: S not a multiple of the seq tile (S=203 -> ts=51, last
    #    block partial for x/out, pe block fully in range).
    S3 = 203
    x3 = jax.random.normal(kx2, (S3, B, D), dtype=jnp.float32)
    out3 = jax.block_until_ready(fwd(x3, pe))
    assert jnp.allclose(out3, positional_encoding_ref(x3, pe), atol=1e-6, rtol=1e-6)

    # 4) max_len == S with a partial trailing block (pe's last block is also
    #    partial, must stay row-aligned with x).
    pe4 = jax.random.normal(kpe, (S3, 1, D), dtype=jnp.float32)
    out4 = jax.block_until_ready(fwd(x3, pe4))
    assert jnp.allclose(out4, positional_encoding_ref(x3, pe4), atol=1e-6, rtol=1e-6)

    # 5) Tiny lane-sparse shape (module's small-default regime): falls back to
    #    the plain XLA add.
    xs = jax.random.normal(kx2, (8, 2, 32), dtype=jnp.float32)
    pes = jax.random.normal(kpe, (max_len, 1, 32), dtype=jnp.float32)
    outs = jax.block_until_ready(fwd(xs, pes))
    assert jnp.allclose(outs, positional_encoding_ref(xs, pes), atol=1e-6, rtol=1e-6)

    # 6) Donated / in-place variant: alias only together with real donation.
    fwd_donated = jax.jit(
        lambda xd, ped: positional_encoding_forward(xd, ped, donate_x=True),
        donate_argnums=0)
    x6 = jax.random.normal(kx, (S, B, D), dtype=jnp.float32)
    ref6 = positional_encoding_ref(x6, pe)
    out6 = jax.block_until_ready(fwd_donated(x6, pe))  # x6 is consumed here
    assert jnp.allclose(out6, ref6, atol=1e-6, rtol=1e-6)

    print("KERNEL_OK")
</pallas_src>

<mosaic_0001>
module attributes {stable_mosaic.version = 11 : i64} {
  func.func @_pe_add_kernel(%arg0: i32, %arg1: memref<16x8x128xf32, #tpu.memory_space<vmem>>, %arg2: memref<16x1x128xf32, #tpu.memory_space<vmem>>, %arg3: memref<16x8x128xf32, #tpu.memory_space<vmem>>) attributes {dimension_semantics = [#tpu.dimension_semantics<parallel>], iteration_bounds = array<i64: 4>, scalar_prefetch = 0 : i64, scratch_operands = 0 : i64, tpu.core_type = #tpu.core_type<tc>, window_params = [{transform_indices = @transform_0, window_bounds = array<i64: 16, 8, 128>}, {transform_indices = @transform_1, window_bounds = array<i64: 16, 1, 128>}, {transform_indices = @transform_2, window_bounds = array<i64: 16, 8, 128>}]} {
    %c0 = arith.constant 0 : index
    %c0_0 = arith.constant 0 : index
    %c0_1 = arith.constant 0 : index
    %0 = vector.load %arg1[%c0, %c0_0, %c0_1] : memref<16x8x128xf32, #tpu.memory_space<vmem>>, vector<16x8x128xf32>
    %c0_2 = arith.constant 0 : index
    %c0_3 = arith.constant 0 : index
    %c0_4 = arith.constant 0 : index
    %1 = vector.load %arg2[%c0_2, %c0_3, %c0_4] : memref<16x1x128xf32, #tpu.memory_space<vmem>>, vector<16x1x128xf32>
    %2 = vector.broadcast %1 : vector<16x1x128xf32> to vector<16x8x128xf32>
    %3 = arith.addf %0, %2 : vector<16x8x128xf32>
    %c0_5 = arith.constant 0 : index
    %c0_6 = arith.constant 0 : index
    %c0_7 = arith.constant 0 : index
    %4 = vector.load %arg3[%c0_5, %c0_6, %c0_7] : memref<16x8x128xf32, #tpu.memory_space<vmem>>, vector<16x8x128xf32>
    tpu.vector_store %arg3[%c0_5, %c0_6, %c0_7], %3 {strides = array<i32>} : memref<16x8x128xf32, #tpu.memory_space<vmem>>, vector<16x8x128xf32>,
    return
  }
  func.func @transform_0(%arg0: i32) -> (i32, i32, i32) {
    %c0_i32 = arith.constant 0 : i32
    %c0_i32_0 = arith.constant 0 : i32
    %c0_i32_1 = arith.constant 0 : i32
    return %arg0, %c0_i32, %c0_i32_0 : i32, i32, i32
  }
  func.func @transform_1(%arg0: i32) -> (i32, i32, i32) {
    %c0_i32 = arith.constant 0 : i32
    %c0_i32_0 = arith.constant 0 : i32
    %c0_i32_1 = arith.constant 0 : i32
    return %arg0, %c0_i32, %c0_i32_0 : i32, i32, i32
  }
  func.func @transform_2(%arg0: i32) -> (i32, i32, i32) {
    %c0_i32 = arith.constant 0 : i32
    %c0_i32_0 = arith.constant 0 : i32
    %c0_i32_1 = arith.constant 0 : i32
    return %arg0, %c0_i32, %c0_i32_0 : i32, i32, i32
  }
}

</mosaic_0001>

<llo_original>
// kernel: positional_encoding_forward.1
$region0: #{positional_encoding_forward.1}
  #allocation0 [shape = 'u32[]', space=smem, size = 0x4, offset = 0x4, fixed_abs, tag = 'smem constant byte address 0x4 - core index']
  #allocation1 [shape = 'u32[144,128]{1,0:T(1,128)}', space=vmem, size = 0x12000, scoped, tag = 'internal scratch']
  %s0 = inlined_call_operand.hbm [shape: f32[64,8,128], index: 0, kind: input, shape index: {}]
  %s1 = inlined_call_operand.hbm [shape: f32[300,1,128], index: 1, kind: input, shape index: {}]
  %s2 = inlined_call_operand.hbm [shape: f32[64,8,128], index: 2, kind: output, shape index: {}]
  %s3 = sld [smem:[#allocation0]]
  $region49: #{positional_encoding_forward.1} parent=0
    _
  %s5 = ssub.s32 1, %s3
  %s6 = scalar_select 0, %s5, %s3
  $region1: #{positional_encoding_forward.1} parent=0
    #allocation2 [shape = 'u8[131072]{0}', space=vmem, size = 0x20000, scoped, tag = 'input window, operand 0']
    #allocation3 [shape = 's32[2]{0}', space=sflag, size = 0x8, scoped, tag = 'scoped memory for positional_encoding_forward.1']
    #allocation4 [shape = 's32[2]{0}', space=sflag, size = 0x8, scoped, tag = 'scoped memory for positional_encoding_forward.1']
    #allocation5 [shape = 'u8[16384]{0}', space=vmem, size = 0x4000, scoped, tag = 'input window, operand 1']
    #allocation6 [shape = 's32[2]{0}', space=sflag, size = 0x8, scoped, tag = 'scoped memory for positional_encoding_forward.1']
    #allocation7 [shape = 'u8[131072]{0}', space=vmem, size = 0x20000, scoped, tag = 'output window, operand 0']
    %7 = vsyncpa [#allocation3], 0
    %s8 = scalar_lea.sflag [#allocation3], 1
    %9 = vsyncpa %s8, 0
    %10 = vsyncpa [#allocation6], 0
    %s11 = scalar_lea.sflag [#allocation6], 1
    %12 = vsyncpa %s11, 0
    %13 = vsyncpa [#allocation4], 0
    %s14 = scalar_lea.sflag [#allocation4], 1
    %15 = vsyncpa %s14, 0
    loop: start=0, step=1, limit=6
    $region2: #{positional_encoding_forward.1} parent=1 // loop_pre_header
      _
    $region3: #{positional_encoding_forward.1} parent=1 // loop_header
      %s17 = sphi 0, %s21
      %p18 = scmp.ge.s32.totalorder %s17, 6
      %s27 = sphi 0, %s29
      %s30 = sphi 0, %s27
      %s31 = sphi 0, %s30
      %s47 = sphi 0, %s31
      %s53 = sphi 0, %s55
      %s56 = sphi 0, %s53
      %s57 = sphi 0, %s56
      %s73 = sphi 0, %s57
      %s79 = sphi 0, %s81
      %s82 = sphi 0, %s79
      %s83 = sphi 0, %s82
      %s99 = sphi 0, %s83
    $region4: #{positional_encoding_forward.1} parent=1 // loop_header_branch
      %20 = sbr.rel (%p18) target = $region8
    $region5: #{positional_encoding_forward.1} parent=1 // loop_body
      %s22 = ssub.s32 %s17, 1
      %s23 = ssub.s32 %s17, 2
      %s24 = sadd.s32 %s17, 1
      %s25 = ssub.s32 %s17, %s24
      %p26 = scmp.eq.s32.totalorder %s25, 0
      %s28 = sadd.s32 %s27, 1
      %s29 = scalar_select %p26, %s27, %s28
      %p32 = pneg %p26
      %p33 = scmp.eq.s32.totalorder %s17, 3
      %p34 = por %p32, %p33
      %p35 = scmp.ne.s32.totalorder %s27, %s30
      %p36 = scmp.eq.s32.totalorder %s17, 0
      %p37 = por %p35, %p36
      %p38 = scmp.ne.s32.totalorder %s27, %s30
      %p39 = scmp.eq.s32.totalorder %s22, 3
      %p40 = por %p38, %p39
      %p41 = scmp.ne.s32.totalorder %s30, %s31
      %p42 = scmp.eq.s32.totalorder %s22, 0
      %p43 = por %p41, %p42
      %p44 = scmp.ne.s32.totalorder %s30, %s31
      %p45 = scmp.eq.s32.totalorder %s23, 3
      %p46 = por %p44, %p45
      %p48 = scmp.ne.s32.totalorder %s31, %s47
      %p49 = scmp.eq.s32.totalorder %s23, 0
      %p50 = por %p48, %p49
      %s51 = ssub.s32 %s17, %s24
      %p52 = scmp.eq.s32.totalorder %s51, 0
      %s54 = sadd.s32 %s53, 1
      %s55 = scalar_select %p52, %s53, %s54
      %p58 = pneg %p52
      %p59 = scmp.eq.s32.totalorder %s17, 3
      %p60 = por %p58, %p59
      %p61 = scmp.ne.s32.totalorder %s53, %s56
      %p62 = scmp.eq.s32.totalorder %s17, 0
      %p63 = por %p61, %p62
      %p64 = scmp.ne.s32.totalorder %s53, %s56
      %p65 = scmp.eq.s32.totalorder %s22, 3
      %p66 = por %p64, %p65
      %p67 = scmp.ne.s32.totalorder %s56, %s57
      %p68 = scmp.eq.s32.totalorder %s22, 0
      %p69 = por %p67, %p68
      %p70 = scmp.ne.s32.totalorder %s56, %s57
      %p71 = scmp.eq.s32.totalorder %s23, 3
      %p72 = por %p70, %p71
      %p74 = scmp.ne.s32.totalorder %s57, %s73
      %p75 = scmp.eq.s32.totalorder %s23, 0
      %p76 = por %p74, %p75
      %s77 = ssub.s32 %s17, %s24
      %p78 = scmp.eq.s32.totalorder %s77, 0
      %s80 = sadd.s32 %s79, 1
      %s81 = scalar_select %p78, %s79, %s80
      %p84 = pneg %p78
      %p85 = scmp.eq.s32.totalorder %s17, 3
      %p86 = por %p84, %p85
      %p87 = scmp.ne.s32.totalorder %s79, %s82
      %p88 = scmp.eq.s32.totalorder %s17, 0
      %p89 = por %p87, %p88
      %p90 = scmp.ne.s32.totalorder %s79, %s82
      %p91 = scmp.eq.s32.totalorder %s22, 3
      %p92 = por %p90, %p91
      %p93 = scmp.ne.s32.totalorder %s82, %s83
      %p94 = scmp.eq.s32.totalorder %s22, 0
      %p95 = por %p93, %p94
      %p96 = scmp.ne.s32.totalorder %s82, %s83
      %p97 = scmp.eq.s32.totalorder %s23, 3
      %p98 = por %p96, %p97
      %p100 = scmp.ne.s32.totalorder %s83, %s99
      %p101 = scmp.eq.s32.totalorder %s23, 0
      %p102 = por %p100, %p101
      %p103 = scmp.le.s32.totalorder 1, %s17
      %p104 = scmp.lt.s32.totalorder %s17, 5
      %p105 = pnand %p103, %p104
      %p106 = pneg %p105
      // Predicated region
      $region9: #{positional_encoding_forward.1} parent=5 // pred_check
        _
      $region10: #{positional_encoding_forward.1} parent=5 // pred_check_branch
        %108 = sbr.rel (%p105) target = $region12
      $region11: #{positional_encoding_forward.1} parent=5 // pred_region
        %s109 = ssub.s32 %s17, 1
      $region12: #{positional_encoding_forward.1} parent=5 // pred_fallthru
        _
      %p110 = scmp.lt.s32.totalorder %s17, 4
      // Predicated region
      $region13: #{positional_encoding_forward.1} parent=5 // pred_check
        %p111 = pneg %p110
      $region14: #{positional_encoding_forward.1} parent=5 // pred_check_branch
        %113 = sbr.rel (%p111) target = $region16
      $region15: #{positional_encoding_forward.1} parent=5 // pred_region
        // Predicated region
        $region17: #{positional_encoding_forward.1} parent=15 // pred_check
          %p114 = pneg %p37
        $region18: #{positional_encoding_forward.1} parent=15 // pred_check_branch
          %116 = sbr.rel (%p114) target = $region20
        $region19: #{positional_encoding_forward.1} parent=15 // pred_region
          %s117 = sand.u32 %s27, 1
          %s118 = scalar_lea.sflag [#allocation3], %s117
          %s119 = sand.u32 %s27, 1
          %s120 = smul.addr %s119, 128
          %s121 = scalar_lea.vmem [#allocation2], %s120
          %s122 = smul.u32 16, %s17
          %s124 = ssub.s32 2048, 2048
          %125 = vsyncadd %s118, %s124
          %s126 = smul.addr %s122, 128
          %s127 = scalar_lea.hbm %s0, %s126
          %s128 = sshll.u32 %s121, 4
          %s129 = int_to_ptr.vmem [resolvable:$true] %s128
          %134 = dma.hbm_to_vmem [thread:$0]  %s127, 2048, %s129, %s118, 128, 128, 8
        $region20: #{positional_encoding_forward.1} parent=15 // pred_fallthru
          _
        // Predicated region
        $region21: #{positional_encoding_forward.1} parent=15 // pred_check
          %p135 = pneg %p63
        $region22: #{positional_encoding_forward.1} parent=15 // pred_check_branch
          %137 = sbr.rel (%p135) target = $region24
        $region23: #{positional_encoding_forward.1} parent=15 // pred_region
          %s138 = sand.u32 %s53, 1
          %s139 = scalar_lea.sflag [#allocation6], %s138
          %s140 = sand.u32 %s53, 1
          %s141 = smul.addr %s140, 16
          %s142 = scalar_lea.vmem [#allocation5], %s141
          %s143 = smul.u32 16, %s17
          %s144 = ssub.s32 300, %s143
          %p145 = scmp.lt.s32.totalorder %s144, 16
          %s146 = scalar_select %p145, %s144, 16
          %s147 = smul.u32 16, %s146
          %s149 = ssub.s32 256, %s147
          %150 = vsyncadd %s139, %s149
          %p151 = scmp.ne.s32.totalorder 0, %s147
          %s152 = smul.addr %s143, 16
          %s153 = scalar_lea.hbm %s1, %s152
          %s154 = sshll.u32 %s142, 4
          %s155 = int_to_ptr.vmem [resolvable:$true] %s154
          %s156 = sshll.u32 %s146, 4
          %160 = dma.hbm_to_vmem [thread:$0]  (%p151), %s153, %s156, %s155, %s139, 16, 16, 1
        $region24: #{positional_encoding_forward.1} parent=15 // pred_fallthru
          _
      $region16: #{positional_encoding_forward.1} parent=5 // pred_fallthru
        _
      %p161 = scmp.le.s32.totalorder 1, %s17
      %p162 = scmp.lt.s32.totalorder %s17, 5
      %p163 = pnand %p161, %p162
      %p164 = pneg %p163
      // Predicated region
      $region25: #{positional_encoding_forward.1} parent=5 // pred_check
        _
      $region26: #{positional_encoding_forward.1} parent=5 // pred_check_branch
        %166 = sbr.rel (%p163) target = $region28
      $region27: #{positional_encoding_forward.1} parent=5 // pred_region
        %s167 = ssub.s32 %s17, 1
        %s168 = sand.u32 %s30, 1
        %s169 = scalar_lea.sflag [#allocation3], %s168
        %s170 = sand.u32 %s30, 1
        %s171 = smul.addr %s170, 128
        %s172 = scalar_lea.vmem [#allocation2], %s171
        // Predicated region
        $region29: #{positional_encoding_forward.1} parent=27 // pred_check
          %p173 = pneg %p43
        $region30: #{positional_encoding_forward.1} parent=27 // pred_check_branch
          %175 = sbr.rel (%p173) target = $region32
        $region31: #{positional_encoding_forward.1} parent=27 // pred_region
          %176 = dma.done %s169, 2048
        $region32: #{positional_encoding_forward.1} parent=27 // pred_fallthru
          _
        %s177 = sand.u32 %s56, 1
        %s178 = scalar_lea.sflag [#allocation6], %s177
        %s179 = sand.u32 %s56, 1
        %s180 = smul.addr %s179, 16
        %s181 = scalar_lea.vmem [#allocation5], %s180
        // Predicated region
        $region33: #{positional_encoding_forward.1} parent=27 // pred_check
          %p182 = pneg %p69
        $region34: #{positional_encoding_forward.1} parent=27 // pred_check_branch
          %184 = sbr.rel (%p182) target = $region36
        $region35: #{positional_encoding_forward.1} parent=27 // pred_region
          %185 = dma.done %s178, 256
        $region36: #{positional_encoding_forward.1} parent=27 // pred_fallthru
          _
        %s186 = sand.u32 %s30, 1
        %s187 = scalar_lea.sflag [#allocation3], %s186
        %s188 = sand.u32 %s30, 1
        %s189 = smul.addr %s188, 128
        %s190 = scalar_lea.vmem [#allocation2], %s189
        %p191 = pneg %p43
        %p192 = pneg %p40
        %s193 = sand.u32 %s56, 1
        %s194 = scalar_lea.sflag [#allocation6], %s193
        %s195 = sand.u32 %s56, 1
        %s196 = smul.addr %s195, 16
        %s197 = scalar_lea.vmem [#allocation5], %s196
        %p198 = pneg %p69
        %p199 = pneg %p66
        %p200 = pneg %p95
        %p201 = pneg %p92
        %s202 = sand.u32 %s82, 1
        %s203 = scalar_lea.sflag [#allocation4], %s202
        %s204 = sand.u32 %s82, 1
        %s205 = smul.addr %s204, 128
        %s206 = scalar_lea.vmem [#allocation7], %s205
        %s207 = smul.u32 16, %s22
        %s208 = smul.u32 16, %s22
        %s209 = ssub.s32 300, %s208
        %p210 = scmp.lt.s32.totalorder %s209, 16
        %s211 = scalar_select %p210, %s209, 16
        %s212 = smul.u32 16, %s211
        %s213 = smul.u32 16, %s22
        %v214 = vld [vmem:[%s172] sm:$0xff]
        %v215 = vld [vmem:[%s172 + $0x8] sm:$0xff]
        %v216 = vld [vmem:[%s172 + $0x10] sm:$0xff]
        %v217 = vld [vmem:[%s172 + $0x18] sm:$0xff]
        %v218 = vld [vmem:[%s172 + $0x20] sm:$0xff]
        %v219 = vld [vmem:[%s172 + $0x28] sm:$0xff]
        %v220 = vld [vmem:[%s172 + $0x30] sm:$0xff]
        %v221 = vld [vmem:[%s172 + $0x38] sm:$0xff]
        %v222 = vld [vmem:[%s172 + $0x40] sm:$0xff]
        %v223 = vld [vmem:[%s172 + $0x48] sm:$0xff]
        %v224 = vld [vmem:[%s172 + $0x50] sm:$0xff]
        %v225 = vld [vmem:[%s172 + $0x58] sm:$0xff]
        %v226 = vld [vmem:[%s172 + $0x60] sm:$0xff]
        %v227 = vld [vmem:[%s172 + $0x68] sm:$0xff]
        %v228 = vld [vmem:[%s172 + $0x70] sm:$0xff]
        %v229 = vld [vmem:[%s172 + $0x78] sm:$0xff]
        %v230 = vld [vmem:[%s181] sm:$0x1]
        %v231 = vld [vmem:[%s181 + $0x1] sm:$0x1]
        %v232 = vld [vmem:[%s181 + $0x2] sm:$0x1]
        %v233 = vld [vmem:[%s181 + $0x3] sm:$0x1]
        %v234 = vld [vmem:[%s181 + $0x4] sm:$0x1]
        %v235 = vld [vmem:[%s181 + $0x5] sm:$0x1]
        %v236 = vld [vmem:[%s181 + $0x6] sm:$0x1]
        %v237 = vld [vmem:[%s181 + $0x7] sm:$0x1]
        %v238 = vld [vmem:[%s181 + $0x8] sm:$0x1]
        %v239 = vld [vmem:[%s181 + $0x9] sm:$0x1]
        %v240 = vld [vmem:[%s181 + $0xa] sm:$0x1]
        %v241 = vld [vmem:[%s181 + $0xb] sm:$0x1]
        %v242 = vld [vmem:[%s181 + $0xc] sm:$0x1]
        %v243 = vld [vmem:[%s181 + $0xd] sm:$0x1]
        %v244 = vld [vmem:[%s181 + $0xe] sm:$0x1]
        %v245 = vld [vmem:[%s181 + $0xf] sm:$0x1]
        %v262 = vlaneseq
        %v263 = vshrl.u32 %v262, 7
        %v264 = vsub.s32 0, %v263
        %v265 = vrot.slane %v230, %v264
        %v266 = vlaneseq
        %v267 = vshrl.u32 %v266, 7
        %v268 = vsub.s32 0, %v267
        %v269 = vrot.slane %v231, %v268
        %v270 = vlaneseq
        %v271 = vshrl.u32 %v270, 7
        %v272 = vsub.s32 0, %v271
        %v273 = vrot.slane %v232, %v272
        %v274 = vlaneseq
        %v275 = vshrl.u32 %v274, 7
        %v276 = vsub.s32 0, %v275
        %v277 = vrot.slane %v233, %v276
        %v278 = vlaneseq
        %v279 = vshrl.u32 %v278, 7
        %v280 = vsub.s32 0, %v279
        %v281 = vrot.slane %v234, %v280
        %v282 = vlaneseq
        %v283 = vshrl.u32 %v282, 7
        %v284 = vsub.s32 0, %v283
        %v285 = vrot.slane %v235, %v284
        %v286 = vlaneseq
        %v287 = vshrl.u32 %v286, 7
        %v288 = vsub.s32 0, %v287
        %v289 = vrot.slane %v236, %v288
        %v290 = vlaneseq
        %v291 = vshrl.u32 %v290, 7
        %v292 = vsub.s32 0, %v291
        %v293 = vrot.slane %v237, %v292
        %v294 = vlaneseq
        %v295 = vshrl.u32 %v294, 7
        %v296 = vsub.s32 0, %v295
        %v297 = vrot.slane %v238, %v296
        %v298 = vlaneseq
        %v299 = vshrl.u32 %v298, 7
        %v300 = vsub.s32 0, %v299
        %v301 = vrot.slane %v239, %v300
        %v302 = vlaneseq
        %v303 = vshrl.u32 %v302, 7
        %v304 = vsub.s32 0, %v303
        %v305 = vrot.slane %v240, %v304
        %v306 = vlaneseq
        %v307 = vshrl.u32 %v306, 7
        %v308 = vsub.s32 0, %v307
        %v309 = vrot.slane %v241, %v308
        %v310 = vlaneseq
        %v311 = vshrl.u32 %v310, 7
        %v312 = vsub.s32 0, %v311
        %v313 = vrot.slane %v242, %v312
        %v314 = vlaneseq
        %v315 = vshrl.u32 %v314, 7
        %v316 = vsub.s32 0, %v315
        %v317 = vrot.slane %v243, %v316
        %v318 = vlaneseq
        %v319 = vshrl.u32 %v318, 7
        %v320 = vsub.s32 0, %v319
        %v321 = vrot.slane %v244, %v320
        %v322 = vlaneseq
        %v323 = vshrl.u32 %v322, 7
        %v324 = vsub.s32 0, %v323
        %v325 = vrot.slane %v245, %v324
        %v342 = vadd.f32 %v214, %v265
        %v343 = vadd.f32 %v215, %v269
        %v344 = vadd.f32 %v216, %v273
        %v345 = vadd.f32 %v217, %v277
        %v346 = vadd.f32 %v218, %v281
        %v347 = vadd.f32 %v219, %v285
        %v348 = vadd.f32 %v220, %v289
        %v349 = vadd.f32 %v221, %v293
        %v350 = vadd.f32 %v222, %v297
        %v351 = vadd.f32 %v223, %v301
        %v352 = vadd.f32 %v224, %v305
        %v353 = vadd.f32 %v225, %v309
        %v354 = vadd.f32 %v226, %v313
        %v355 = vadd.f32 %v227, %v317
        %v356 = vadd.f32 %v228, %v321
        %v357 = vadd.f32 %v229, %v325
        %358 = vst [vmem:[%s206] sm:$0xff] %v342
        %359 = vst [vmem:[%s206 + $0x8] sm:$0xff] %v343
        %360 = vst [vmem:[%s206 + $0x10] sm:$0xff] %v344
        %361 = vst [vmem:[%s206 + $0x18] sm:$0xff] %v345
        %362 = vst [vmem:[%s206 + $0x20] sm:$0xff] %v346
        %363 = vst [vmem:[%s206 + $0x28] sm:$0xff] %v347
        %364 = vst [vmem:[%s206 + $0x30] sm:$0xff] %v348
        %365 = vst [vmem:[%s206 + $0x38] sm:$0xff] %v349
        %366 = vst [vmem:[%s206 + $0x40] sm:$0xff] %v350
        %367 = vst [vmem:[%s206 + $0x48] sm:$0xff] %v351
        %368 = vst [vmem:[%s206 + $0x50] sm:$0xff] %v352
        %369 = vst [vmem:[%s206 + $0x58] sm:$0xff] %v353
        %370 = vst [vmem:[%s206 + $0x60] sm:$0xff] %v354
        %371 = vst [vmem:[%s206 + $0x68] sm:$0xff] %v355
        %372 = vst [vmem:[%s206 + $0x70] sm:$0xff] %v356
        %373 = vst [vmem:[%s206 + $0x78] sm:$0xff] %v357
        %s374 = sand.u32 %s82, 1
        %s375 = scalar_lea.sflag [#allocation4], %s374
        %s376 = sand.u32 %s82, 1
        %s377 = smul.addr %s376, 128
        %s378 = scalar_lea.vmem [#allocation7], %s377
        // Predicated region
        $region37: #{positional_encoding_forward.1} parent=27 // pred_check
          %p379 = pneg %p92
        $region38: #{positional_encoding_forward.1} parent=27 // pred_check_branch
          %381 = sbr.rel (%p379) target = $region40
        $region39: #{positional_encoding_forward.1} parent=27 // pred_region
          %s382 = smul.u32 16, %s22
          %s384 = ssub.s32 2048, 2048
          %385 = vsyncadd %s375, %s384
          %s386 = smul.addr %s382, 128
          %s387 = scalar_lea.hbm %s2, %s386
          %s388 = sshll.u32 %s378, 4
          %s389 = int_to_ptr.vmem [resolvable:$true] %s388
          %394 = dma.vmem_to_hbm [thread:$0]  %s389, 2048, %s387, %s375, 128, 128, 8
        $region40: #{positional_encoding_forward.1} parent=27 // pred_fallthru
          _
      $region28: #{positional_encoding_forward.1} parent=5 // pred_fallthru
        _
      %p395 = scmp.le.s32.totalorder 2, %s17
      // Predicated region
      $region41: #{positional_encoding_forward.1} parent=5 // pred_check
        %p396 = pneg %p395
      $region42: #{positional_encoding_forward.1} parent=5 // pred_check_branch
        %398 = sbr.rel (%p396) target = $region44
      $region43: #{positional_encoding_forward.1} parent=5 // pred_region
        %s399 = ssub.s32 %s17, 2
        // Predicated region
        $region45: #{positional_encoding_forward.1} parent=43 // pred_check
          %p400 = pneg %p98
        $region46: #{positional_encoding_forward.1} parent=43 // pred_check_branch
          %402 = sbr.rel (%p400) target = $region48
        $region47: #{positional_encoding_forward.1} parent=43 // pred_region
          %s403 = sand.u32 %s83, 1
          %s404 = scalar_lea.sflag [#allocation4], %s403
          %s405 = sand.u32 %s83, 1
          %s406 = smul.addr %s405, 128
          %s407 = scalar_lea.vmem [#allocation7], %s406
          %408 = dma.done %s404, 2048
        $region48: #{positional_encoding_forward.1} parent=43 // pred_fallthru
          _
      $region44: #{positional_encoding_forward.1} parent=5 // pred_fallthru
        _
    $region6: #{positional_encoding_forward.1} parent=1 // loop_footer
      %s21 = sadd.s32 1, %s17
    $region7: #{positional_encoding_forward.1} parent=1 // loop_footer_branch
      %16 = sbr.rel target = $region3
    $region8: #{positional_encoding_forward.1} parent=1 // loop_exit
      _
    %409 = vsyncpa [#allocation3], 1
    %s410 = scalar_lea.sflag [#allocation3], 1
    %411 = vsyncpa %s410, 1
    %412 = vsyncpa [#allocation6], 1
    %s413 = scalar_lea.sflag [#allocation6], 1
    %414 = vsyncpa %s413, 1
    %415 = vsyncpa [#allocation4], 1
    %s416 = scalar_lea.sflag [#allocation4], 1
    %417 = vsyncpa %s416, 1

</llo_original>
